<compile_context>
chip_gen: v7x
topology: tpu7x:2x2x1
jax: 0.10.0
libtpu: 0.0.40
codegen_flags: <defaults>
</compile_context>

<pallas_src>
import numpy as np
import jax
import jax.numpy as jnp
from jax.experimental import pallas as pl
from jax.experimental.pallas import tpu as pltpu


def _decomp_kernel_finite(w_ref, x_ref, res_ref, trend_ref):
    # w_ref: (S, S), resident across the grid.  x/res/trend refs: (S, TD).
    x = x_ref[...]
    trend = jnp.dot(w_ref[...], x, preferred_element_type=jnp.float32)
    trend_ref[...] = trend.astype(trend_ref.dtype)
    # res = x - trend (W_high = I - W_low): exact for finite real inputs, saves the
    # second full MXU matmul and the W_high HBM->VMEM traffic.
    res_ref[...] = (x.astype(jnp.float32) - trend).astype(res_ref.dtype)


def _decomp_kernel_nan_to_num(w_ref, x_ref, res_ref, trend_ref):
    x = x_ref[...]
    trend = jnp.dot(w_ref[...], x, preferred_element_type=jnp.float32)
    trend = jnp.nan_to_num(trend)
    trend_ref[...] = trend.astype(trend_ref.dtype)
    # TODO(synk): for non-finite x this clamps (x - trend) instead of torch's
    # nan_to_num(Re(ifft(high-pass))); identical for finite inputs (the spec case).
    res_ref[...] = jnp.nan_to_num(x.astype(jnp.float32) - trend).astype(res_ref.dtype)


def make_fourier_decomp(seq_len: int, frequency_threshold: float, *, assume_finite: bool = True):
    """Builds the real low-frequency projection matrix once and returns a callable
    equivalent to fourier_decomp(frequency_threshold).forward for real inputs."""
    # W_low = Re(F^{-1} diag(mask) F), built once via np.fft (O(S^2 log S) setup).
    freqs = np.fft.fftfreq(seq_len, d=1.0)
    low_mask = (np.abs(freqs) <= frequency_threshold).astype(np.complex128)
    dft = np.fft.fft(np.eye(seq_len), axis=0)                      # DFT matrix
    w_np = np.real(np.fft.ifft(low_mask[:, None] * dft, axis=0)).astype(np.float32)
    w_f32 = jnp.asarray(w_np)
    w_bf16 = jnp.asarray(w_np.astype(jnp.bfloat16))
    # TODO(synk): for large S (f32 weight approaching ~1/4 of chip VMEM, i.e. S >= ~2048
    # on v7x's 64 MiB/TC) switch to a K-tiled reduction axis with a VMEM f32 accumulator,
    # or factor W_low = B @ B^T with B the (S, m) truncated real cos/sin basis
    # (m ~ 2*thr*S+1) to cut flops and resident weight for small thresholds.

    kernel = _decomp_kernel_finite if assume_finite else _decomp_kernel_nan_to_num

    try:
        vmem_cap = int(pltpu.get_tpu_info().vmem_capacity_bytes)
    except Exception:
        vmem_cap = 64 << 20   # conservative: v7x per-TC VMEM

    def fourier_decomp(x):
        B, S, D = x.shape
        assert S == seq_len, "x seq_len must match the compiled weight"
        dtype = x.dtype
        itemsize = jnp.dtype(dtype).itemsize

        w = w_bf16 if dtype == jnp.bfloat16 else w_f32
        w_bytes = int(w.size) * jnp.dtype(w.dtype).itemsize
        vmem_budget = max(16 << 20, vmem_cap - (8 << 20))

        # Lane tile over D in the native (B, S, D) layout (no wrapper repack).
        if D % 128 == 0:
            tile_d = 128
            for cand in (2048, 1024, 512, 256, 128):
                # resident weight + double-buffered x/res/trend tiles must fit VMEM
                if D % cand == 0 and w_bytes + 2 * 3 * S * cand * itemsize <= vmem_budget:
                    tile_d = cand
                    break
            # Ensure >= 2 grid steps so both v7x TensorCores get work.
            while B * (D // tile_d) < 2 and tile_d > 128 and (tile_d // 2) % 128 == 0:
                tile_d //= 2
        else:
            # D not a multiple of 128: take the full (untiled) last dim so no padding
            # or repacking is needed on the host side (Pallas masks the partial lanes).
            tile_d = D
        grid = (B, D // tile_d)

        vmem_needed = w_bytes + 2 * 3 * S * tile_d * itemsize
        vmem_limit = int(min(vmem_cap - (2 << 20), max(32 << 20, vmem_needed + (4 << 20))))

        out_sd = jax.ShapeDtypeStruct((B, S, D), dtype)
        res, trend = pl.pallas_call(
            kernel,
            out_shape=(out_sd, out_sd),
            grid_spec=pltpu.PrefetchScalarGridSpec(
                num_scalar_prefetch=0,
                grid=grid,
                in_specs=[
                    # Weight: constant index_map -> resident across the grid; single
                    # buffered to avoid a useless 2x VMEM allocation.
                    pl.BlockSpec((S, S), lambda b, j: (0, 0),
                                 pipeline_mode=pl.Buffered(1)),
                    # x in native layout; batch dim squeezed out of the kernel view.
                    pl.BlockSpec((pl.Squeezed(), S, tile_d), lambda b, j: (b, 0, j)),
                ],
                out_specs=[
                    pl.BlockSpec((pl.Squeezed(), S, tile_d), lambda b, j: (b, 0, j)),  # res
                    pl.BlockSpec((pl.Squeezed(), S, tile_d), lambda b, j: (b, 0, j)),  # trend
                ],
            ),
            compiler_params=pltpu.CompilerParams(
                dimension_semantics=("parallel", "parallel"),
                vmem_limit_bytes=vmem_limit,
            ),
            cost_estimate=pl.CostEstimate(
                flops=2 * S * S * B * D,
                transcendentals=0,
                bytes_accessed=w_bytes + 3 * B * S * D * itemsize,
            ),
        )(w, x)
        return res, trend

    return fourier_decomp


def _reference(x, frequency_threshold):
    """Pure-JAX reference mirroring the PyTorch forward."""
    B, S, D = x.shape
    fft_result = jnp.fft.fft(x, axis=1)
    freqs = jnp.fft.fftfreq(S, d=1.0)
    low_mask = jnp.abs(freqs) <= frequency_threshold
    low = jnp.where(low_mask[None, :, None], fft_result, 0.0)
    high = jnp.where(low_mask[None, :, None], 0.0, fft_result)
    trend = jnp.nan_to_num(jnp.real(jnp.fft.ifft(low, axis=1)))
    res = jnp.nan_to_num(jnp.real(jnp.fft.ifft(high, axis=1)))
    return res, trend


if __name__ == "__main__":
    frequency_threshold = 0.2
    B, S, D = 2, 8, 32
    key = jax.random.PRNGKey(0)
    x = jax.random.normal(key, (B, S, D), dtype=jnp.float32)

    fn = make_fourier_decomp(S, frequency_threshold)
    res, trend = fn(x)
    jax.block_until_ready((res, trend))

    res_ref, trend_ref = _reference(x, frequency_threshold)
    assert jnp.allclose(trend, trend_ref, atol=1e-4), "trend mismatch"
    assert jnp.allclose(res, res_ref, atol=1e-4), "res mismatch"
    assert jnp.allclose(res + trend, x, atol=1e-4), "decomposition mismatch"

    print("KERNEL_OK")
</pallas_src>

<mosaic_0001>
module attributes {stable_mosaic.version = 11 : i64} {
  func.func @_decomp_kernel_finite(%arg0: i32, %arg1: i32, %arg2: memref<8x8xf32, #tpu.memory_space<vmem>>, %arg3: memref<1x8x32xf32, #tpu.memory_space<vmem>>, %arg4: memref<1x8x32xf32, #tpu.memory_space<vmem>>, %arg5: memref<1x8x32xf32, #tpu.memory_space<vmem>>) attributes {dimension_semantics = [#tpu.dimension_semantics<parallel>, #tpu.dimension_semantics<parallel>], iteration_bounds = array<i64: 2, 1>, scalar_prefetch = 0 : i64, scratch_operands = 0 : i64, tpu.core_type = #tpu.core_type<tc>, window_params = [{pipeline_mode = #tpu.pipeline_mode<synchronous>, transform_indices = @transform_0, window_bounds = array<i64: 8, 8>}, {transform_indices = @transform_1, window_bounds = array<i64: 1, 8, 32>}, {transform_indices = @transform_2, window_bounds = array<i64: 1, 8, 32>}, {transform_indices = @transform_3, window_bounds = array<i64: 1, 8, 32>}]} {
    %c0 = arith.constant 0 : index
    %c0_0 = arith.constant 0 : index
    %c0_1 = arith.constant 0 : index
    %0 = vector.load %arg3[%c0, %c0_0, %c0_1] : memref<1x8x32xf32, #tpu.memory_space<vmem>>, vector<1x8x32xf32>
    %1 = vector.shape_cast %0 : vector<1x8x32xf32> to vector<8x32xf32>
    %c0_2 = arith.constant 0 : index
    %c0_3 = arith.constant 0 : index
    %2 = vector.load %arg2[%c0_2, %c0_3] : memref<8x8xf32, #tpu.memory_space<vmem>>, vector<8x8xf32>
    %cst = arith.constant dense<0.000000e+00> : vector<8x32xf32>
    %3 = tpu.matmul %2, %1, %cst {dimension_numbers = #tpu.dot_dimension_numbers<[1], [0], [0], [1], [0, 0, 1, 1], [], []>} : vector<8x8xf32>, vector<8x32xf32>, vector<8x32xf32> -> vector<8x32xf32>
    %c0_4 = arith.constant 0 : index
    %c0_5 = arith.constant 0 : index
    %c0_6 = arith.constant 0 : index
    %4 = vector.load %arg5[%c0_4, %c0_5, %c0_6] : memref<1x8x32xf32, #tpu.memory_space<vmem>>, vector<1x8x32xf32>
    %5 = vector.shape_cast %4 : vector<1x8x32xf32> to vector<8x32xf32>
    %6 = vector.shape_cast %3 : vector<8x32xf32> to vector<1x8x32xf32>
    tpu.vector_store %arg5[%c0_4, %c0_5, %c0_6], %6 {strides = array<i32>} : memref<1x8x32xf32, #tpu.memory_space<vmem>>, vector<1x8x32xf32>,
    %7 = arith.subf %1, %3 : vector<8x32xf32>
    %c0_7 = arith.constant 0 : index
    %c0_8 = arith.constant 0 : index
    %c0_9 = arith.constant 0 : index
    %8 = vector.load %arg4[%c0_7, %c0_8, %c0_9] : memref<1x8x32xf32, #tpu.memory_space<vmem>>, vector<1x8x32xf32>
    %9 = vector.shape_cast %8 : vector<1x8x32xf32> to vector<8x32xf32>
    %10 = vector.shape_cast %7 : vector<8x32xf32> to vector<1x8x32xf32>
    tpu.vector_store %arg4[%c0_7, %c0_8, %c0_9], %10 {strides = array<i32>} : memref<1x8x32xf32, #tpu.memory_space<vmem>>, vector<1x8x32xf32>,
    return
  }
  func.func @transform_0(%arg0: i32, %arg1: i32) -> (i32, i32) {
    %c0_i32 = arith.constant 0 : i32
    %c0_i32_0 = arith.constant 0 : i32
    %c0_i32_1 = arith.constant 0 : i32
    return %c0_i32, %c0_i32_0 : i32, i32
  }
  func.func @transform_1(%arg0: i32, %arg1: i32) -> (i32, i32, i32) {
    %c0_i32 = arith.constant 0 : i32
    %c0_i32_0 = arith.constant 0 : i32
    return %arg0, %c0_i32, %arg1 : i32, i32, i32
  }
  func.func @transform_2(%arg0: i32, %arg1: i32) -> (i32, i32, i32) {
    %c0_i32 = arith.constant 0 : i32
    %c0_i32_0 = arith.constant 0 : i32
    return %arg0, %c0_i32, %arg1 : i32, i32, i32
  }
  func.func @transform_3(%arg0: i32, %arg1: i32) -> (i32, i32, i32) {
    %c0_i32 = arith.constant 0 : i32
    %c0_i32_0 = arith.constant 0 : i32
    return %arg0, %c0_i32, %arg1 : i32, i32, i32
  }
}

</mosaic_0001>

<llo_original>
// kernel: tpu_custom_call.1
$region0: #{tpu_custom_call.1}
  #allocation0 [shape = 'u32[]', space=smem, size = 0x4, offset = 0x4, fixed_abs, tag = 'smem constant byte address 0x4 - core index']
  #allocation1 [shape = 'u32[144,128]{1,0:T(1,128)}', space=vmem, size = 0x12000, scoped, tag = 'internal scratch']
  %s0 = inlined_call_operand.hbm [shape: f32[8,8], index: 0, kind: input, shape index: {}]
  %s1 = inlined_call_operand.hbm [shape: f32[2,8,32], index: 1, kind: input, shape index: {}]
  %s2 = inlined_call_operand.hbm [shape: f32[2,8,32], index: 2, kind: output, shape index: {0}]
  %s3 = inlined_call_operand.hbm [shape: f32[2,8,32], index: 3, kind: output, shape index: {1}]
  %4 = xla_tuple %s2, %s3
  %s5 = sld [smem:[#allocation0]]
  $region57: #{tpu_custom_call.1} parent=0
    _
  %s7 = ssub.s32 1, %s5
  %s8 = scalar_select 0, %s7, %s5
  $region1: #{tpu_custom_call.1} parent=0
    #allocation2 [shape = 'u8[4096]{0}', space=vmem, size = 0x1000, scoped, tag = 'input window, operand 0, single buffered']
    #allocation3 [shape = 's32[2]{0}', space=sflag, size = 0x8, scoped, tag = 'scoped memory for tpu_custom_call.1']
    #allocation4 [shape = 's32[2]{0}', space=sflag, size = 0x8, scoped, tag = 'scoped memory for tpu_custom_call.1']
    #allocation5 [shape = 'u8[8192]{0}', space=vmem, size = 0x2000, scoped, tag = 'input window, operand 1']
    #allocation6 [shape = 's32[2]{0}', space=sflag, size = 0x8, scoped, tag = 'scoped memory for tpu_custom_call.1']
    #allocation7 [shape = 'u8[8192]{0}', space=vmem, size = 0x2000, scoped, tag = 'output window, operand 0']
    #allocation8 [shape = 'u8[8192]{0}', space=vmem, size = 0x2000, scoped, tag = 'output window, operand 1']
    #allocation9 [shape = 's32[2]{0}', space=sflag, size = 0x8, scoped, tag = 'scoped memory for tpu_custom_call.1']
    %9 = vsyncpa [#allocation3], 0
    %10 = vsyncpa [#allocation6], 0
    %s11 = scalar_lea.sflag [#allocation6], 1
    %12 = vsyncpa %s11, 0
    %13 = vsyncpa [#allocation4], 0
    %s14 = scalar_lea.sflag [#allocation4], 1
    %15 = vsyncpa %s14, 0
    %16 = vsyncpa [#allocation9], 0
    %s17 = scalar_lea.sflag [#allocation9], 1
    %18 = vsyncpa %s17, 0
    loop: start=0, step=1, limit=4
    $region2: #{tpu_custom_call.1} parent=1 // loop_pre_header
      _
    $region3: #{tpu_custom_call.1} parent=1 // loop_header
      %s20 = sphi 0, %s24
      %p21 = scmp.ge.s32.totalorder %s20, 4
      %s27 = sphi 0, %s39
      %s28 = sphi 0, %s35
      %s29 = sphi 0, %s27
      %s30 = sphi 0, %s28
      %s31 = sphi 0, %s29
      %s32 = sphi 0, %s30
      %s40 = sphi 0, %s40
      %s42 = sphi 0, %s40
      %s43 = sphi 0, %s42
      %s57 = sphi 0, %s43
      %s65 = sphi 0, %s67
      %s68 = sphi 0, %s65
      %s69 = sphi 0, %s68
      %s85 = sphi 0, %s69
      %s93 = sphi 0, %s95
      %s96 = sphi 0, %s93
      %s97 = sphi 0, %s96
      %s113 = sphi 0, %s97
      %s121 = sphi 0, %s123
      %s124 = sphi 0, %s121
      %s125 = sphi 0, %s124
      %s141 = sphi 0, %s125
    $region4: #{tpu_custom_call.1} parent=1 // loop_header_branch
      %23 = sbr.rel (%p21) target = $region8
    $region5: #{tpu_custom_call.1} parent=1 // loop_body
      %s25 = ssub.s32 %s20, 1
      %s26 = ssub.s32 %s20, 2
      %s33 = sadd.s32 1, %s28
      %p34 = scmp.ge.s32.totalorder %s33, 1
      %s35 = scalar_select %p34, 0, %s33
      %s36 = sadd.s32 1, %s27
      %s37 = scalar_select %p34, %s36, %s27
      %p38 = scmp.ge.s32.totalorder %s37, 2
      %s39 = scalar_select %p38, 0, %s37
      %s41 = sadd.s32 %s40, 1
      %p44 = scmp.eq.s32.totalorder %s20, 1
      %p45 = scmp.ne.s32.totalorder %s40, %s42
      %p46 = scmp.eq.s32.totalorder %s20, 0
      %p47 = por %p45, %p46
      %p48 = scmp.ne.s32.totalorder %s40, %s42
      %p49 = scmp.eq.s32.totalorder %s25, 1
      %p50 = por %p48, %p49
      %p51 = scmp.ne.s32.totalorder %s42, %s43
      %p52 = scmp.eq.s32.totalorder %s25, 0
      %p53 = por %p51, %p52
      %p54 = scmp.ne.s32.totalorder %s42, %s43
      %p55 = scmp.eq.s32.totalorder %s26, 1
      %p56 = por %p54, %p55
      %p58 = scmp.ne.s32.totalorder %s43, %s57
      %p59 = scmp.eq.s32.totalorder %s26, 0
      %p60 = por %p58, %p59
      %s61 = ssub.s32 %s27, %s39
      %s62 = ssub.s32 %s28, %s35
      %s63 = sor.u32 %s61, %s62
      %p64 = scmp.eq.s32.totalorder %s63, 0
      %s66 = sadd.s32 %s65, 1
      %s67 = scalar_select %p64, %s65, %s66
      %p70 = pneg %p64
      %p71 = scmp.eq.s32.totalorder %s20, 1
      %p72 = por %p70, %p71
      %p73 = scmp.ne.s32.totalorder %s65, %s68
      %p74 = scmp.eq.s32.totalorder %s20, 0
      %p75 = por %p73, %p74
      %p76 = scmp.ne.s32.totalorder %s65, %s68
      %p77 = scmp.eq.s32.totalorder %s25, 1
      %p78 = por %p76, %p77
      %p79 = scmp.ne.s32.totalorder %s68, %s69
      %p80 = scmp.eq.s32.totalorder %s25, 0
      %p81 = por %p79, %p80
      %p82 = scmp.ne.s32.totalorder %s68, %s69
      %p83 = scmp.eq.s32.totalorder %s26, 1
      %p84 = por %p82, %p83
      %p86 = scmp.ne.s32.totalorder %s69, %s85
      %p87 = scmp.eq.s32.totalorder %s26, 0
      %p88 = por %p86, %p87
      %s89 = ssub.s32 %s27, %s39
      %s90 = ssub.s32 %s28, %s35
      %s91 = sor.u32 %s89, %s90
      %p92 = scmp.eq.s32.totalorder %s91, 0
      %s94 = sadd.s32 %s93, 1
      %s95 = scalar_select %p92, %s93, %s94
      %p98 = pneg %p92
      %p99 = scmp.eq.s32.totalorder %s20, 1
      %p100 = por %p98, %p99
      %p101 = scmp.ne.s32.totalorder %s93, %s96
      %p102 = scmp.eq.s32.totalorder %s20, 0
      %p103 = por %p101, %p102
      %p104 = scmp.ne.s32.totalorder %s93, %s96
      %p105 = scmp.eq.s32.totalorder %s25, 1
      %p106 = por %p104, %p105
      %p107 = scmp.ne.s32.totalorder %s96, %s97
      %p108 = scmp.eq.s32.totalorder %s25, 0
      %p109 = por %p107, %p108
      %p110 = scmp.ne.s32.totalorder %s96, %s97
      %p111 = scmp.eq.s32.totalorder %s26, 1
      %p112 = por %p110, %p111
      %p114 = scmp.ne.s32.totalorder %s97, %s113
      %p115 = scmp.eq.s32.totalorder %s26, 0
      %p116 = por %p114, %p115
      %s117 = ssub.s32 %s27, %s39
      %s118 = ssub.s32 %s28, %s35
      %s119 = sor.u32 %s117, %s118
      %p120 = scmp.eq.s32.totalorder %s119, 0
      %s122 = sadd.s32 %s121, 1
      %s123 = scalar_select %p120, %s121, %s122
      %p126 = pneg %p120
      %p127 = scmp.eq.s32.totalorder %s20, 1
      %p128 = por %p126, %p127
      %p129 = scmp.ne.s32.totalorder %s121, %s124
      %p130 = scmp.eq.s32.totalorder %s20, 0
      %p131 = por %p129, %p130
      %p132 = scmp.ne.s32.totalorder %s121, %s124
      %p133 = scmp.eq.s32.totalorder %s25, 1
      %p134 = por %p132, %p133
      %p135 = scmp.ne.s32.totalorder %s124, %s125
      %p136 = scmp.eq.s32.totalorder %s25, 0
      %p137 = por %p135, %p136
      %p138 = scmp.ne.s32.totalorder %s124, %s125
      %p139 = scmp.eq.s32.totalorder %s26, 1
      %p140 = por %p138, %p139
      %p142 = scmp.ne.s32.totalorder %s125, %s141
      %p143 = scmp.eq.s32.totalorder %s26, 0
      %p144 = por %p142, %p143
      %p145 = scmp.le.s32.totalorder 1, %s20
      %p146 = scmp.lt.s32.totalorder %s20, 3
      %p147 = pnand %p145, %p146
      %p148 = pneg %p147
      // Predicated region
      $region9: #{tpu_custom_call.1} parent=5 // pred_check
        _
      $region10: #{tpu_custom_call.1} parent=5 // pred_check_branch
        %150 = sbr.rel (%p147) target = $region12
      $region11: #{tpu_custom_call.1} parent=5 // pred_region
        %s151 = ssub.s32 %s20, 1
        // Predicated region
        $region13: #{tpu_custom_call.1} parent=11 // pred_check
          %p152 = pneg %p53
        $region14: #{tpu_custom_call.1} parent=11 // pred_check_branch
          %154 = sbr.rel (%p152) target = $region16
        $region15: #{tpu_custom_call.1} parent=11 // pred_region
          %s156 = ssub.s32 128, 128
          %157 = vsyncadd [#allocation3], %s156
          %s159 = sshll.u32 [#allocation2], 4
          %s160 = int_to_ptr.vmem [resolvable:$true] %s159
          %162 = dma.hbm_to_vmem [thread:$0]  %s0, 128, %s160, [#allocation3]
        $region16: #{tpu_custom_call.1} parent=11 // pred_fallthru
          _
      $region12: #{tpu_custom_call.1} parent=5 // pred_fallthru
        _
      %p163 = scmp.lt.s32.totalorder %s20, 2
      // Predicated region
      $region17: #{tpu_custom_call.1} parent=5 // pred_check
        %p164 = pneg %p163
      $region18: #{tpu_custom_call.1} parent=5 // pred_check_branch
        %166 = sbr.rel (%p164) target = $region20
      $region19: #{tpu_custom_call.1} parent=5 // pred_region
        // Predicated region
        $region21: #{tpu_custom_call.1} parent=19 // pred_check
          %p167 = pneg %p75
        $region22: #{tpu_custom_call.1} parent=19 // pred_check_branch
          %169 = sbr.rel (%p167) target = $region24
        $region23: #{tpu_custom_call.1} parent=19 // pred_region
          %s170 = sand.u32 %s65, 1
          %s171 = scalar_lea.sflag [#allocation6], %s170
          %s172 = sand.u32 %s65, 1
          %s173 = smul.addr %s172, 8
          %s174 = scalar_lea.vmem [#allocation5], %s173
          %s176 = ssub.s32 128, 128
          %177 = vsyncadd %s171, %s176
          %s178 = sadd.s32 %s28, %s27
          %s179 = smul.addr %s178, 128
          %s180 = scalar_lea.hbm %s1, %s179
          %s182 = sshll.u32 %s174, 4
          %s183 = int_to_ptr.vmem [resolvable:$true] %s182
          %185 = dma.hbm_to_vmem [thread:$0]  %s180, 128, %s183, %s171
        $region24: #{tpu_custom_call.1} parent=19 // pred_fallthru
          _
      $region20: #{tpu_custom_call.1} parent=5 // pred_fallthru
        _
      %p186 = scmp.le.s32.totalorder 1, %s20
      %p187 = scmp.lt.s32.totalorder %s20, 3
      %p188 = pnand %p186, %p187
      %p189 = pneg %p188
      // Predicated region
      $region25: #{tpu_custom_call.1} parent=5 // pred_check
        _
      $region26: #{tpu_custom_call.1} parent=5 // pred_check_branch
        %191 = sbr.rel (%p188) target = $region28
      $region27: #{tpu_custom_call.1} parent=5 // pred_region
        %s192 = ssub.s32 %s20, 1
        // Predicated region
        $region29: #{tpu_custom_call.1} parent=27 // pred_check
          %p193 = pneg %p53
        $region30: #{tpu_custom_call.1} parent=27 // pred_check_branch
          %195 = sbr.rel (%p193) target = $region32
        $region31: #{tpu_custom_call.1} parent=27 // pred_region
          %196 = dma.done [#allocation3], 128
        $region32: #{tpu_custom_call.1} parent=27 // pred_fallthru
          _
        %s197 = sand.u32 %s68, 1
        %s198 = scalar_lea.sflag [#allocation6], %s197
        %s199 = sand.u32 %s68, 1
        %s200 = smul.addr %s199, 8
        %s201 = scalar_lea.vmem [#allocation5], %s200
        // Predicated region
        $region33: #{tpu_custom_call.1} parent=27 // pred_check
          %p202 = pneg %p81
        $region34: #{tpu_custom_call.1} parent=27 // pred_check_branch
          %204 = sbr.rel (%p202) target = $region36
        $region35: #{tpu_custom_call.1} parent=27 // pred_region
          %205 = dma.done %s198, 128
        $region36: #{tpu_custom_call.1} parent=27 // pred_fallthru
          _
        %p206 = pneg %p53
        %p207 = pneg %p50
        %s208 = sand.u32 %s68, 1
        %s209 = scalar_lea.sflag [#allocation6], %s208
        %s210 = sand.u32 %s68, 1
        %s211 = smul.addr %s210, 8
        %s212 = scalar_lea.vmem [#allocation5], %s211
        %p213 = pneg %p81
        %p214 = pneg %p78
        %p215 = pneg %p109
        %p216 = pneg %p106
        %s217 = sand.u32 %s96, 1
        %s218 = scalar_lea.sflag [#allocation4], %s217
        %s219 = sand.u32 %s96, 1
        %s220 = smul.addr %s219, 8
        %s221 = scalar_lea.vmem [#allocation7], %s220
        %p222 = pneg %p137
        %p223 = pneg %p134
        %s224 = sand.u32 %s124, 1
        %s225 = scalar_lea.sflag [#allocation9], %s224
        %s226 = sand.u32 %s124, 1
        %s227 = smul.addr %s226, 8
        %s228 = scalar_lea.vmem [#allocation8], %s227
        %v229 = vld [vmem:[%s201] sm:$0xff]
        %v230 = vld [vmem:[#allocation2] sm:$0xff]
        %vm231 = vcmask 64512
        %v233 = vsel %vm231, %v230, 0
        %235 = vmatprep.subr.mxu0 0.0
        %236 = vmatpush1.msra.mxu0 %v229
        %237 = vmatprep.subr.mxu0 0.0
        %238 = vmatpush1.msra.mxu0 0.0
        %239 = vmatprep.subr.mxu0 0.0
        %240 = vmatpush1.msra.mxu0 0.0
        %241 = vmatprep.subr.mxu0 0.0
        %242 = vmatpush1.msra.mxu0 0.0
        %243 = vmatprep.subr.mxu0 0.0
        %244 = vmatpush1.msra.mxu0 0.0
        %245 = vmatprep.subr.mxu0 0.0
        %246 = vmatpush1.msra.mxu0 0.0
        %247 = vmatprep.subr.mxu0 0.0
        %248 = vmatpush1.msra.mxu0 0.0
        %249 = vmatprep.subr.mxu0 0.0
        %250 = vmatpush1.msra.mxu0 0.0
        %251 = vmatprep.subr.mxu0 0.0
        %252 = vmatpush1.msra.mxu0 0.0
        %253 = vmatprep.subr.mxu0 0.0
        %254 = vmatpush1.msra.mxu0 0.0
        %255 = vmatprep.subr.mxu0 0.0
        %256 = vmatpush1.msra.mxu0 0.0
        %257 = vmatprep.subr.mxu0 0.0
        %258 = vmatpush1.msra.mxu0 0.0
        %259 = vmatprep.subr.mxu0 0.0
        %260 = vmatpush1.msra.mxu0 0.0
        %261 = vmatprep.subr.mxu0 0.0
        %262 = vmatpush1.msra.mxu0 0.0
        %263 = vmatprep.subr.mxu0 0.0
        %264 = vmatpush1.msra.mxu0 0.0
        %265 = vmatprep.subr.mxu0 0.0
        %266 = vmatpush1.msra.mxu0 0.0
        %267 = vmatprep.subr.mxu0 0.0
        %268 = vmatpush1.msra.mxu0 0.0
        %269 = vmatprep.subr.mxu0 0.0
        %270 = vmatpush1.msra.mxu0 0.0
        %271 = vmatprep.subr.mxu0 0.0
        %272 = vmatpush1.msra.mxu0 0.0
        %273 = vmatprep.subr.mxu0 0.0
        %274 = vmatpush1.msra.mxu0 0.0
        %275 = vmatprep.subr.mxu0 0.0
        %276 = vmatpush1.msra.mxu0 0.0
        %277 = vmatprep.subr.mxu0 0.0
        %278 = vmatpush1.msra.mxu0 0.0
        %279 = vmatprep.subr.mxu0 0.0
        %280 = vmatpush1.msra.mxu0 0.0
        %281 = vmatprep.subr.mxu0 0.0
        %282 = vmatpush1.msra.mxu0 0.0
        %283 = vmatprep.subr.mxu0 0.0
        %284 = vmatpush1.msra.mxu0 0.0
        %285 = vmatprep.subr.mxu0 0.0
        %286 = vmatpush1.msra.mxu0 0.0
        %287 = vmatprep.subr.mxu0 0.0
        %288 = vmatpush1.msra.mxu0 0.0
        %289 = vmatprep.subr.mxu0 0.0
        %290 = vmatpush1.msra.mxu0 0.0
        %291 = vmatprep.subr.mxu0 0.0
        %292 = vmatpush1.msra.mxu0 0.0
        %293 = vmatprep.subr.mxu0 0.0
        %294 = vmatpush1.msra.mxu0 0.0
        %295 = vmatprep.subr.mxu0 0.0
        %296 = vmatpush1.msra.mxu0 0.0
        %297 = vmatprep.subr.mxu0 0.0
        %298 = vmatpush1.msra.mxu0 0.0
        %299 = vmatprep.mubr.f32.mxu0 0.0
        %300 = vmatmul.mubr.f32.gmra.mrb[0].mxu0 %v233
        %v301 = vpop.f32.mrb[0].mxu0
        %v302 = vadd.f32 0.0, %v301
        %v303 = vpop.f32.mrb[0].mxu0
        %304 = vdwg.mxu0
        %vm305 = vcmask 261120
        %306 = vst.msk [vmem:[%s228] sm:$0xff] %vm305, %v302
        %v307 = vsub.f32 %v229, %v302
        %308 = vst.msk [vmem:[%s221] sm:$0xff] %vm305, %v307
        %s309 = sand.u32 %s96, 1
        %s310 = scalar_lea.sflag [#allocation4], %s309
        %s311 = sand.u32 %s96, 1
        %s312 = smul.addr %s311, 8
        %s313 = scalar_lea.vmem [#allocation7], %s312
        %s314 = sand.u32 %s124, 1
        %s315 = scalar_lea.sflag [#allocation9], %s314
        %s316 = sand.u32 %s124, 1
        %s317 = smul.addr %s316, 8
        %s318 = scalar_lea.vmem [#allocation8], %s317
        // Predicated region
        $region37: #{tpu_custom_call.1} parent=27 // pred_check
          %p319 = pneg %p106
        $region38: #{tpu_custom_call.1} parent=27 // pred_check_branch
          %321 = sbr.rel (%p319) target = $region40
        $region39: #{tpu_custom_call.1} parent=27 // pred_region
          %s323 = ssub.s32 128, 128
          %324 = vsyncadd %s310, %s323
          %s325 = sadd.s32 %s30, %s29
          %s326 = smul.addr %s325, 128
          %s327 = scalar_lea.hbm %s2, %s326
          %s329 = sshll.u32 %s313, 4
          %s330 = int_to_ptr.vmem [resolvable:$true] %s329
          %332 = dma.vmem_to_hbm [thread:$0]  %s330, 128, %s327, %s310
        $region40: #{tpu_custom_call.1} parent=27 // pred_fallthru
          _
        // Predicated region
        $region41: #{tpu_custom_call.1} parent=27 // pred_check
          %p333 = pneg %p134
        $region42: #{tpu_custom_call.1} parent=27 // pred_check_branch
          %335 = sbr.rel (%p333) target = $region44
        $region43: #{tpu_custom_call.1} parent=27 // pred_region
          %s337 = ssub.s32 128, 128
          %338 = vsyncadd %s315, %s337
          %s339 = sadd.s32 %s30, %s29
          %s340 = smul.addr %s339, 128
          %s341 = scalar_lea.hbm %s3, %s340
          %s343 = sshll.u32 %s318, 4
          %s344 = int_to_ptr.vmem [resolvable:$true] %s343
          %346 = dma.vmem_to_hbm [thread:$0]  %s344, 128, %s341, %s315
        $region44: #{tpu_custom_call.1} parent=27 // pred_fallthru
          _
      $region28: #{tpu_custom_call.1} parent=5 // pred_fallthru
        _
      %p347 = scmp.le.s32.totalorder 2, %s20
      // Predicated region
      $region45: #{tpu_custom_call.1} parent=5 // pred_check
        %p348 = pneg %p347
      $region46: #{tpu_custom_call.1} parent=5 // pred_check_branch
        %350 = sbr.rel (%p348) target = $region48
      $region47: #{tpu_custom_call.1} parent=5 // pred_region
        %s351 = ssub.s32 %s20, 2
        // Predicated region
        $region49: #{tpu_custom_call.1} parent=47 // pred_check
          %p352 = pneg %p112
        $region50: #{tpu_custom_call.1} parent=47 // pred_check_branch
          %354 = sbr.rel (%p352) target = $region52
        $region51: #{tpu_custom_call.1} parent=47 // pred_region
          %s355 = sand.u32 %s97, 1
          %s356 = scalar_lea.sflag [#allocation4], %s355
          %s357 = sand.u32 %s97, 1
          %s358 = smul.addr %s357, 8
          %s359 = scalar_lea.vmem [#allocation7], %s358
          %360 = dma.done %s356, 128
        $region52: #{tpu_custom_call.1} parent=47 // pred_fallthru
          _
        // Predicated region
        $region53: #{tpu_custom_call.1} parent=47 // pred_check
          %p361 = pneg %p140
        $region54: #{tpu_custom_call.1} parent=47 // pred_check_branch
          %363 = sbr.rel (%p361) target = $region56
        $region55: #{tpu_custom_call.1} parent=47 // pred_region
          %s364 = sand.u32 %s125, 1
          %s365 = scalar_lea.sflag [#allocation9], %s364
          %s366 = sand.u32 %s125, 1
          %s367 = smul.addr %s366, 8
          %s368 = scalar_lea.vmem [#allocation8], %s367
          %369 = dma.done %s365, 128
        $region56: #{tpu_custom_call.1} parent=47 // pred_fallthru
          _
      $region48: #{tpu_custom_call.1} parent=5 // pred_fallthru
        _
    $region6: #{tpu_custom_call.1} parent=1 // loop_footer
      %s24 = sadd.s32 1, %s20
    $region7: #{tpu_custom_call.1} parent=1 // loop_footer_branch
      %19 = sbr.rel target = $region3
    $region8: #{tpu_custom_call.1} parent=1 // loop_exit
      _
    %370 = vsyncpa [#allocation3], 1
    %s371 = scalar_lea.sflag [#allocation3], 1
    %372 = vsyncpa %s371, 1
    %373 = vsyncpa [#allocation6], 1
    %s374 = scalar_lea.sflag [#allocation6], 1
    %375 = vsyncpa %s374, 1
    %376 = vsyncpa [#allocation4], 1
    %s377 = scalar_lea.sflag [#allocation4], 1
    %378 = vsyncpa %s377, 1
    %379 = vsyncpa [#allocation9], 1
    %s380 = scalar_lea.sflag [#allocation9], 1
    %381 = vsyncpa %s380, 1

</llo_original>
